<compile_context>
chip_gen: v7x
topology: tpu7x:2x2x1
jax: 0.10.0
libtpu: 0.0.40
codegen_flags: <defaults>
</compile_context>

<pallas_src>
import jax
import jax.numpy as jnp
from jax.experimental import pallas as pl
from jax.experimental.pallas import tpu as pltpu

MAX_LENGTH = 10
HIDDEN_SIZE = 32
OUTPUT_SIZE = 32   # vocabulary size


def _attn_decoder_kernel(act_ref, enc_ref, wa_ref, wc_ref, wih_ref, whh_ref,
                         wo_ref, bias_ref, out_ref):
    """Fused attention-decoder step.

    act_ref  : (1, 2H)  = [embedded | hidden]
    enc_ref  : (L, H)   encoder outputs
    wa_ref   : (2H, L)  attn Linear, pre-transposed
    wc_ref   : (2H, H)  attn_combine Linear, pre-transposed
    wih_ref  : (H, 3H)  GRU input->hidden, gate columns r|z|n
    whh_ref  : (H, 3H)  GRU hidden->hidden, gate columns r|z|n
    wo_ref   : (H, V)   output Linear, pre-transposed
    bias_ref : (8, 128) one bias vector per sublane row:
               row 0: attn bias (L), row 1: combine bias (H),
               row 2: GRU b_ih (3H),  row 3: GRU b_hh (3H), row 4: out bias (V)
    out_ref  : (3, W)   packed output: row 0 log_probs, row 1 h_new, row 2 attn_w
    """
    f32 = jnp.float32
    H = wih_ref.shape[0]
    L = enc_ref.shape[0]
    V = wo_ref.shape[1]

    act = act_ref[...]                                   # (1, 2H)
    emb = act[:, :H]                                     # (1, H)
    hid = act[:, H:]                                     # (1, H)

    ba = bias_ref[0:1, :L]
    bc = bias_ref[1:2, :H]
    b_i = bias_ref[2:3, :3 * H]
    b_h = bias_ref[3:4, :3 * H]
    bo = bias_ref[4:5, :V]

    # ---- attention weights: softmax(cat(emb, hid) @ Wa + ba), one MXU pass ----
    attn_logits = jnp.dot(act, wa_ref[...], preferred_element_type=f32) + ba   # (1, L)
    m = jnp.max(attn_logits, axis=-1, keepdims=True)
    e = jnp.exp(attn_logits - m)
    aw = e * pl.reciprocal(jnp.sum(e, axis=-1, keepdims=True), approx=True)

    # ---- attn_applied = attn_weights @ encoder_outputs ----
    attn_applied = jnp.dot(aw, enc_ref[...], preferred_element_type=f32)       # (1, H)

    # ---- attn_combine(cat(emb, attn_applied)): two dots on sublane halves of Wc ----
    comb = (jnp.dot(emb, wc_ref[:H, :], preferred_element_type=f32)
            + jnp.dot(attn_applied, wc_ref[H:, :], preferred_element_type=f32)
            + bc)                                                              # (1, H)

    # ---- n_layers = 1 body: relu then fused GRU cell ----
    x = jnp.maximum(comb, 0.0)

    # PyTorch gate order (r, z, n); gi/gh are (1, 3H), sliced per gate.
    gi = jnp.dot(x, wih_ref[...], preferred_element_type=f32) + b_i
    gh = jnp.dot(hid, whh_ref[...], preferred_element_type=f32) + b_h

    r = jax.nn.sigmoid(gi[:, 0:H] + gh[:, 0:H])
    z = jax.nn.sigmoid(gi[:, H:2 * H] + gh[:, H:2 * H])
    n = jnp.tanh(gi[:, 2 * H:3 * H] + r * gh[:, 2 * H:3 * H])
    h_new = (1.0 - z) * n + z * hid                                            # (1, H)

    # ---- output layer + log_softmax ----
    logits = jnp.dot(h_new, wo_ref[...], preferred_element_type=f32) + bo      # (1, V)
    m2 = jnp.max(logits, axis=-1, keepdims=True)
    shifted = logits - m2
    lse = jnp.log(jnp.sum(jnp.exp(shifted), axis=-1, keepdims=True))
    logp = shifted - lse

    # ---- single packed output slab (one write-back DMA) ----
    out_ref[...] = jnp.zeros_like(out_ref)
    out_ref[0:1, :V] = logp
    out_ref[1:2, :H] = h_new
    out_ref[2:3, :L] = aw


def init_params(key, hidden_size=HIDDEN_SIZE, output_size=OUTPUT_SIZE,
                max_length=MAX_LENGTH):
    """Deterministic synthetic parameters in PyTorch layout."""
    H, V, L = hidden_size, output_size, max_length
    ks = jax.random.split(key, 10)
    scale = 0.1
    p = {}
    p["embedding"] = scale * jax.random.normal(ks[0], (V, H), jnp.float32)
    p["attn_w"] = scale * jax.random.normal(ks[1], (L, 2 * H), jnp.float32)   # nn.Linear(2H, L)
    p["attn_b"] = scale * jax.random.normal(ks[2], (L,), jnp.float32)
    p["comb_w"] = scale * jax.random.normal(ks[3], (H, 2 * H), jnp.float32)   # nn.Linear(2H, H)
    p["comb_b"] = scale * jax.random.normal(ks[4], (H,), jnp.float32)
    p["gru_w_ih"] = scale * jax.random.normal(ks[5], (3 * H, H), jnp.float32)  # nn.GRU(H, H)
    p["gru_w_hh"] = scale * jax.random.normal(ks[6], (3 * H, H), jnp.float32)
    p["gru_b_ih"] = scale * jax.random.normal(ks[7], (3 * H,), jnp.float32)
    p["gru_b_hh"] = scale * jax.random.normal(ks[8], (3 * H,), jnp.float32)
    p["out_w"] = scale * jax.random.normal(ks[9], (V, H), jnp.float32)         # nn.Linear(H, V)
    p["out_b"] = jnp.zeros((V,), jnp.float32)
    return p


def prepare_params(params):
    """One-time re-layout of PyTorch-shaped weights for the kernel.

    Done once (not per decode step): transposes to (in, out), GRU gate fusion
    to (H, 3H), and packing of all bias vectors into a single (8, 128) tile.
    """
    V, H = params["embedding"].shape
    L = params["attn_w"].shape[0]
    bw = max(128, -(-3 * H // 128) * 128)
    bias = jnp.zeros((8, bw), jnp.float32)
    bias = bias.at[0, :L].set(params["attn_b"])
    bias = bias.at[1, :H].set(params["comb_b"])
    bias = bias.at[2, :3 * H].set(params["gru_b_ih"])
    bias = bias.at[3, :3 * H].set(params["gru_b_hh"])
    bias = bias.at[4, :V].set(params["out_b"])
    return {
        "embedding": params["embedding"].astype(jnp.float32),   # (V, H)
        "wa": params["attn_w"].T.astype(jnp.float32),           # (2H, L)
        "wc": params["comb_w"].T.astype(jnp.float32),           # (2H, H)
        "w_ih": params["gru_w_ih"].T.astype(jnp.float32),       # (H, 3H) cols r|z|n
        "w_hh": params["gru_w_hh"].T.astype(jnp.float32),       # (H, 3H) cols r|z|n
        "wo": params["out_w"].T.astype(jnp.float32),            # (H, V)
        "bias": bias,                                            # (8, 128)
    }


def attn_decoder_forward(prepped, token_id, hidden, encoder_output, encoder_outputs):
    """Mirrors AttnDecoderRNN.forward (eval mode). `encoder_output` is unused,
    exactly as in the PyTorch module. `prepped` comes from prepare_params()."""
    H = prepped["embedding"].shape[1]
    V = prepped["wo"].shape[1]
    L = prepped["wa"].shape[1]
    slab_w = ((max(V, H, L) + 127) // 128) * 128

    # Glue (per step): embedding gather + cat with hidden -> single (1, 2H) row.
    # Dropout is identity in eval mode.
    emb = prepped["embedding"][token_id].reshape(1, H)
    hid0 = hidden.reshape(1, H).astype(jnp.float32)
    act = jnp.concatenate([emb, hid0], axis=1)                       # (1, 2H)
    enc = encoder_outputs.astype(jnp.float32)                        # (L, H)

    inputs = (act, enc, prepped["wa"], prepped["wc"],
              prepped["w_ih"], prepped["w_hh"], prepped["wo"], prepped["bias"])

    vmem = pl.BlockSpec(memory_space=pltpu.MemorySpace.VMEM)
    slab = pl.pallas_call(
        _attn_decoder_kernel,
        out_shape=jax.ShapeDtypeStruct((3, slab_w), jnp.float32),
        in_specs=[vmem] * len(inputs),
        out_specs=vmem,
    )(*inputs)

    log_probs = slab[0:1, :V]
    h_new = slab[1:2, :H]
    attn_weights = slab[2:3, :L]
    # TODO(synk): for multi-token greedy decode, move the whole loop inside one
    # pallas_call (weights VMEM-resident across steps, hidden carried in
    # scratch, parallel grid axis for the second TensorCore on v7x).
    return log_probs, h_new.reshape(1, 1, H), attn_weights


def _reference_forward(params, token_id, hidden, encoder_outputs,
                       hidden_size=HIDDEN_SIZE):
    """Pure-JAX reference of the PyTorch forward (eval mode)."""
    H = hidden_size
    emb = params["embedding"][token_id].reshape(1, H)
    hid = hidden.reshape(1, H)
    cat1 = jnp.concatenate([emb, hid], axis=1)
    aw = jax.nn.softmax(cat1 @ params["attn_w"].T + params["attn_b"], axis=1)
    attn_applied = aw @ encoder_outputs
    cat2 = jnp.concatenate([emb, attn_applied], axis=1)
    x = jax.nn.relu(cat2 @ params["comb_w"].T + params["comb_b"])
    gi = x @ params["gru_w_ih"].T + params["gru_b_ih"]
    gh = hid @ params["gru_w_hh"].T + params["gru_b_hh"]
    r = jax.nn.sigmoid(gi[:, :H] + gh[:, :H])
    z = jax.nn.sigmoid(gi[:, H:2 * H] + gh[:, H:2 * H])
    n = jnp.tanh(gi[:, 2 * H:] + r * gh[:, 2 * H:])
    h_new = (1 - z) * n + z * hid
    logits = h_new @ params["out_w"].T + params["out_b"]
    return jax.nn.log_softmax(logits, axis=1), h_new.reshape(1, 1, H), aw


if __name__ == "__main__":
    key = jax.random.PRNGKey(0)
    pkey, k1, k2, k3 = jax.random.split(key, 4)
    params = init_params(pkey)
    prepped = prepare_params(params)          # one-time weight re-layout

    # Inputs consistent with the PyTorch forward: single token id, hidden state
    # (1,1,H), encoder_output (unused, (1,H)), encoder_outputs (L,H).
    token_id = jnp.array(3, dtype=jnp.int32)
    hidden = 0.1 * jax.random.normal(k1, (1, 1, HIDDEN_SIZE), jnp.float32)
    encoder_output = 0.1 * jax.random.normal(k2, (1, HIDDEN_SIZE), jnp.float32)
    encoder_outputs = 0.1 * jax.random.normal(k3, (MAX_LENGTH, HIDDEN_SIZE), jnp.float32)

    step = jax.jit(attn_decoder_forward)
    log_probs, new_hidden, attn_weights = step(
        prepped, token_id, hidden, encoder_output, encoder_outputs)
    jax.block_until_ready((log_probs, new_hidden, attn_weights))

    ref_lp, ref_h, ref_aw = _reference_forward(params, token_id, hidden, encoder_outputs)
    assert log_probs.shape == (1, OUTPUT_SIZE)
    assert new_hidden.shape == (1, 1, HIDDEN_SIZE)
    assert attn_weights.shape == (1, MAX_LENGTH)
    # atol loosened to 1e-3 because the softmax uses pl.reciprocal(approx=True)
    # (~2^-12 relative error); observed errors are far below this bound.
    assert jnp.allclose(log_probs, ref_lp, atol=1e-3)
    assert jnp.allclose(new_hidden, ref_h, atol=1e-3)
    assert jnp.allclose(attn_weights, ref_aw, atol=1e-3)

    print("KERNEL_OK")
</pallas_src>

<mosaic_0001>
module attributes {stable_mosaic.version = 11 : i64} {
  func.func @_attn_decoder_kernel(%arg0: memref<1x64xf32, #tpu.memory_space<vmem>>, %arg1: memref<10x32xf32, #tpu.memory_space<vmem>>, %arg2: memref<64x10xf32, #tpu.memory_space<vmem>>, %arg3: memref<64x32xf32, #tpu.memory_space<vmem>>, %arg4: memref<32x96xf32, #tpu.memory_space<vmem>>, %arg5: memref<32x96xf32, #tpu.memory_space<vmem>>, %arg6: memref<32x32xf32, #tpu.memory_space<vmem>>, %arg7: memref<8x128xf32, #tpu.memory_space<vmem>>, %arg8: memref<3x128xf32, #tpu.memory_space<vmem>>) attributes {dimension_semantics = [], scalar_prefetch = 0 : i64, scratch_operands = 0 : i64, tpu.core_type = #tpu.core_type<tc>} {
    %c0 = arith.constant 0 : index
    %c0_0 = arith.constant 0 : index
    %0 = vector.load %arg0[%c0, %c0_0] : memref<1x64xf32, #tpu.memory_space<vmem>>, vector<1x64xf32>
    %1 = vector.extract_strided_slice %0 {offsets = [0, 0], sizes = [1, 32], strides = [1, 1]} : vector<1x64xf32> to vector<1x32xf32>
    %2 = vector.extract_strided_slice %0 {offsets = [0, 32], sizes = [1, 32], strides = [1, 1]} : vector<1x64xf32> to vector<1x32xf32>
    %c0_1 = arith.constant 0 : index
    %c0_2 = arith.constant 0 : index
    %3 = vector.load %arg7[%c0_1, %c0_2] : memref<8x128xf32, #tpu.memory_space<vmem>>, vector<1x10xf32>
    %c1 = arith.constant 1 : index
    %c0_3 = arith.constant 0 : index
    %4 = vector.load %arg7[%c1, %c0_3] : memref<8x128xf32, #tpu.memory_space<vmem>>, vector<1x32xf32>
    %c2 = arith.constant 2 : index
    %c0_4 = arith.constant 0 : index
    %5 = vector.load %arg7[%c2, %c0_4] : memref<8x128xf32, #tpu.memory_space<vmem>>, vector<1x96xf32>
    %c3 = arith.constant 3 : index
    %c0_5 = arith.constant 0 : index
    %6 = vector.load %arg7[%c3, %c0_5] : memref<8x128xf32, #tpu.memory_space<vmem>>, vector<1x96xf32>
    %c4 = arith.constant 4 : index
    %c0_6 = arith.constant 0 : index
    %7 = vector.load %arg7[%c4, %c0_6] : memref<8x128xf32, #tpu.memory_space<vmem>>, vector<1x32xf32>
    %c0_7 = arith.constant 0 : index
    %c0_8 = arith.constant 0 : index
    %8 = vector.load %arg2[%c0_7, %c0_8] : memref<64x10xf32, #tpu.memory_space<vmem>>, vector<64x10xf32>
    %cst = arith.constant dense<0.000000e+00> : vector<1x10xf32>
    %9 = tpu.matmul %0, %8, %cst {dimension_numbers = #tpu.dot_dimension_numbers<[1], [0], [0], [1], [0, 0, 1, 1], [], []>} : vector<1x64xf32>, vector<64x10xf32>, vector<1x10xf32> -> vector<1x10xf32>
    %10 = arith.addf %9, %3 : vector<1x10xf32>
    %cst_9 = arith.constant dense<0xFF800000> : vector<1xf32>
    %11 = vector.multi_reduction <maximumf>, %10, %cst_9 [1] : vector<1x10xf32> to vector<1xf32>
    %12 = vector.shape_cast %11 : vector<1xf32> to vector<1x1xf32>
    %13 = vector.broadcast %12 : vector<1x1xf32> to vector<1x10xf32>
    %14 = arith.subf %10, %13 : vector<1x10xf32>
    %15 = math.exp %14 : vector<1x10xf32>
    %cst_10 = arith.constant dense<0.000000e+00> : vector<1xf32>
    %16 = vector.multi_reduction <add>, %15, %cst_10 [1] : vector<1x10xf32> to vector<1xf32>
    %17 = vector.shape_cast %16 : vector<1xf32> to vector<1x1xf32>
    %18 = tpu.reciprocal %17 {approx = true} : vector<1x1xf32> -> vector<1x1xf32>
    %19 = vector.broadcast %18 : vector<1x1xf32> to vector<1x10xf32>
    %20 = arith.mulf %15, %19 : vector<1x10xf32>
    %c0_11 = arith.constant 0 : index
    %c0_12 = arith.constant 0 : index
    %21 = vector.load %arg1[%c0_11, %c0_12] : memref<10x32xf32, #tpu.memory_space<vmem>>, vector<10x32xf32>
    %cst_13 = arith.constant dense<0.000000e+00> : vector<1x32xf32>
    %22 = tpu.matmul %20, %21, %cst_13 {dimension_numbers = #tpu.dot_dimension_numbers<[1], [0], [0], [1], [0, 0, 1, 1], [], []>} : vector<1x10xf32>, vector<10x32xf32>, vector<1x32xf32> -> vector<1x32xf32>
    %c0_14 = arith.constant 0 : index
    %c0_15 = arith.constant 0 : index
    %23 = vector.load %arg3[%c0_14, %c0_15] : memref<64x32xf32, #tpu.memory_space<vmem>>, vector<32x32xf32>
    %cst_16 = arith.constant dense<0.000000e+00> : vector<1x32xf32>
    %24 = tpu.matmul %1, %23, %cst_16 {dimension_numbers = #tpu.dot_dimension_numbers<[1], [0], [0], [1], [0, 0, 1, 1], [], []>} : vector<1x32xf32>, vector<32x32xf32>, vector<1x32xf32> -> vector<1x32xf32>
    %c32 = arith.constant 32 : index
    %c0_17 = arith.constant 0 : index
    %25 = vector.load %arg3[%c32, %c0_17] : memref<64x32xf32, #tpu.memory_space<vmem>>, vector<32x32xf32>
    %cst_18 = arith.constant dense<0.000000e+00> : vector<1x32xf32>
    %26 = tpu.matmul %22, %25, %cst_18 {dimension_numbers = #tpu.dot_dimension_numbers<[1], [0], [0], [1], [0, 0, 1, 1], [], []>} : vector<1x32xf32>, vector<32x32xf32>, vector<1x32xf32> -> vector<1x32xf32>
    %27 = arith.addf %24, %26 : vector<1x32xf32>
    %28 = arith.addf %27, %4 : vector<1x32xf32>
    %cst_19 = arith.constant 0.000000e+00 : f32
    %29 = vector.broadcast %cst_19 : f32 to vector<1x32xf32>
    %30 = arith.maximumf %28, %29 : vector<1x32xf32>
    %c0_20 = arith.constant 0 : index
    %c0_21 = arith.constant 0 : index
    %31 = vector.load %arg4[%c0_20, %c0_21] : memref<32x96xf32, #tpu.memory_space<vmem>>, vector<32x96xf32>
    %cst_22 = arith.constant dense<0.000000e+00> : vector<1x96xf32>
    %32 = tpu.matmul %30, %31, %cst_22 {dimension_numbers = #tpu.dot_dimension_numbers<[1], [0], [0], [1], [0, 0, 1, 1], [], []>} : vector<1x32xf32>, vector<32x96xf32>, vector<1x96xf32> -> vector<1x96xf32>
    %33 = arith.addf %32, %5 : vector<1x96xf32>
    %c0_23 = arith.constant 0 : index
    %c0_24 = arith.constant 0 : index
    %34 = vector.load %arg5[%c0_23, %c0_24] : memref<32x96xf32, #tpu.memory_space<vmem>>, vector<32x96xf32>
    %cst_25 = arith.constant dense<0.000000e+00> : vector<1x96xf32>
    %35 = tpu.matmul %2, %34, %cst_25 {dimension_numbers = #tpu.dot_dimension_numbers<[1], [0], [0], [1], [0, 0, 1, 1], [], []>} : vector<1x32xf32>, vector<32x96xf32>, vector<1x96xf32> -> vector<1x96xf32>
    %36 = arith.addf %35, %6 : vector<1x96xf32>
    %37 = vector.extract_strided_slice %33 {offsets = [0, 0], sizes = [1, 32], strides = [1, 1]} : vector<1x96xf32> to vector<1x32xf32>
    %38 = vector.extract_strided_slice %36 {offsets = [0, 0], sizes = [1, 32], strides = [1, 1]} : vector<1x96xf32> to vector<1x32xf32>
    %39 = arith.addf %37, %38 : vector<1x32xf32>
    %40 = arith.negf %39 : vector<1x32xf32>
    %41 = math.exp %40 : vector<1x32xf32>
    %cst_26 = arith.constant 1.000000e+00 : f32
    %42 = vector.broadcast %cst_26 : f32 to vector<1x32xf32>
    %43 = arith.addf %42, %41 : vector<1x32xf32>
    %44 = arith.divf %42, %43 : vector<1x32xf32>
    %45 = vector.extract_strided_slice %33 {offsets = [0, 32], sizes = [1, 32], strides = [1, 1]} : vector<1x96xf32> to vector<1x32xf32>
    %46 = vector.extract_strided_slice %36 {offsets = [0, 32], sizes = [1, 32], strides = [1, 1]} : vector<1x96xf32> to vector<1x32xf32>
    %47 = arith.addf %45, %46 : vector<1x32xf32>
    %48 = arith.negf %47 : vector<1x32xf32>
    %49 = math.exp %48 : vector<1x32xf32>
    %cst_27 = arith.constant 1.000000e+00 : f32
    %50 = vector.broadcast %cst_27 : f32 to vector<1x32xf32>
    %51 = arith.addf %50, %49 : vector<1x32xf32>
    %52 = arith.divf %50, %51 : vector<1x32xf32>
    %53 = vector.extract_strided_slice %33 {offsets = [0, 64], sizes = [1, 32], strides = [1, 1]} : vector<1x96xf32> to vector<1x32xf32>
    %54 = vector.extract_strided_slice %36 {offsets = [0, 64], sizes = [1, 32], strides = [1, 1]} : vector<1x96xf32> to vector<1x32xf32>
    %55 = arith.mulf %44, %54 : vector<1x32xf32>
    %56 = arith.addf %53, %55 : vector<1x32xf32>
    %57 = math.tanh %56 : vector<1x32xf32>
    %cst_28 = arith.constant 1.000000e+00 : f32
    %58 = vector.broadcast %cst_28 : f32 to vector<1x32xf32>
    %59 = arith.subf %58, %52 : vector<1x32xf32>
    %60 = arith.mulf %59, %57 : vector<1x32xf32>
    %61 = arith.mulf %52, %2 : vector<1x32xf32>
    %62 = arith.addf %60, %61 : vector<1x32xf32>
    %c0_29 = arith.constant 0 : index
    %c0_30 = arith.constant 0 : index
    %63 = vector.load %arg6[%c0_29, %c0_30] : memref<32x32xf32, #tpu.memory_space<vmem>>, vector<32x32xf32>
    %cst_31 = arith.constant dense<0.000000e+00> : vector<1x32xf32>
    %64 = tpu.matmul %62, %63, %cst_31 {dimension_numbers = #tpu.dot_dimension_numbers<[1], [0], [0], [1], [0, 0, 1, 1], [], []>} : vector<1x32xf32>, vector<32x32xf32>, vector<1x32xf32> -> vector<1x32xf32>
    %65 = arith.addf %64, %7 : vector<1x32xf32>
    %cst_32 = arith.constant dense<0xFF800000> : vector<1xf32>
    %66 = vector.multi_reduction <maximumf>, %65, %cst_32 [1] : vector<1x32xf32> to vector<1xf32>
    %67 = vector.shape_cast %66 : vector<1xf32> to vector<1x1xf32>
    %68 = vector.broadcast %67 : vector<1x1xf32> to vector<1x32xf32>
    %69 = arith.subf %65, %68 : vector<1x32xf32>
    %70 = math.exp %69 : vector<1x32xf32>
    %cst_33 = arith.constant dense<0.000000e+00> : vector<1xf32>
    %71 = vector.multi_reduction <add>, %70, %cst_33 [1] : vector<1x32xf32> to vector<1xf32>
    %72 = vector.shape_cast %71 : vector<1xf32> to vector<1x1xf32>
    %73 = math.log %72 : vector<1x1xf32>
    %74 = vector.broadcast %73 : vector<1x1xf32> to vector<1x32xf32>
    %75 = arith.subf %69, %74 : vector<1x32xf32>
    %cst_34 = arith.constant 0.000000e+00 : f32
    %76 = vector.broadcast %cst_34 : f32 to vector<3x128xf32>
    %c0_35 = arith.constant 0 : index
    %c0_36 = arith.constant 0 : index
    %77 = vector.load %arg8[%c0_35, %c0_36] : memref<3x128xf32, #tpu.memory_space<vmem>>, vector<3x128xf32>
    tpu.vector_store %arg8[%c0_35, %c0_36], %76 {strides = array<i32>} : memref<3x128xf32, #tpu.memory_space<vmem>>, vector<3x128xf32>,
    %c0_37 = arith.constant 0 : index
    %c0_38 = arith.constant 0 : index
    %78 = vector.load %arg8[%c0_37, %c0_38] : memref<3x128xf32, #tpu.memory_space<vmem>>, vector<1x32xf32>
    tpu.vector_store %arg8[%c0_37, %c0_38], %75 {strides = array<i32>} : memref<3x128xf32, #tpu.memory_space<vmem>>, vector<1x32xf32>,
    %c1_39 = arith.constant 1 : index
    %c0_40 = arith.constant 0 : index
    %79 = vector.load %arg8[%c1_39, %c0_40] : memref<3x128xf32, #tpu.memory_space<vmem>>, vector<1x32xf32>
    tpu.vector_store %arg8[%c1_39, %c0_40], %62 {strides = array<i32>} : memref<3x128xf32, #tpu.memory_space<vmem>>, vector<1x32xf32>,
    %c2_41 = arith.constant 2 : index
    %c0_42 = arith.constant 0 : index
    %80 = vector.load %arg8[%c2_41, %c0_42] : memref<3x128xf32, #tpu.memory_space<vmem>>, vector<1x10xf32>
    tpu.vector_store %arg8[%c2_41, %c0_42], %20 {strides = array<i32>} : memref<3x128xf32, #tpu.memory_space<vmem>>, vector<1x10xf32>,
    return
  }
}

</mosaic_0001>

<llo_original>
// kernel: attn_decoder_forward.1
$region0: #{attn_decoder_forward.1}
  #allocation0 [shape = 'u32[]', space=smem, size = 0x4, offset = 0x4, fixed_abs, tag = 'smem constant byte address 0x4 - core index']
  #allocation1 [shape = 'u32[144,128]{1,0:T(1,128)}', space=vmem, size = 0x12000, scoped, tag = 'internal scratch']
  %s0 = inlined_call_operand.vmem [shape: f32[1,64], index: 0, kind: input, shape index: {}]
  %s1 = inlined_call_operand.vmem [shape: f32[10,32], index: 1, kind: input, shape index: {}]
  %s2 = inlined_call_operand.vmem [shape: f32[64,10], index: 2, kind: input, shape index: {}]
  %s3 = inlined_call_operand.vmem [shape: f32[64,32], index: 3, kind: input, shape index: {}]
  %s4 = inlined_call_operand.vmem [shape: f32[32,96], index: 4, kind: input, shape index: {}]
  %s5 = inlined_call_operand.vmem [shape: f32[32,96], index: 5, kind: input, shape index: {}]
  %s6 = inlined_call_operand.vmem [shape: f32[32,32], index: 6, kind: input, shape index: {}]
  %s7 = inlined_call_operand.vmem [shape: f32[8,128], index: 7, kind: input, shape index: {}]
  %s8 = inlined_call_operand.vmem [shape: f32[3,128], index: 8, kind: output, shape index: {}]
  %s9 = sld [smem:[#allocation0]]
  $region42: #{attn_decoder_forward.1} parent=0
    _
  %s11 = ssub.s32 1, %s9
  %s12 = scalar_select 0, %s11, %s9
  // Predicated region
  $region2: #{attn_decoder_forward.1} parent=0 // pred_check
    _
  $region3: #{attn_decoder_forward.1} parent=0 // pred_check_branch
    %14 = sbr.rel (0) target = $region5
  $region4: #{attn_decoder_forward.1} parent=0 // pred_region
    _
  $region5: #{attn_decoder_forward.1} parent=0 // pred_fallthru
    _
  // Predicated region
  $region6: #{attn_decoder_forward.1} parent=0 // pred_check
    _
  $region7: #{attn_decoder_forward.1} parent=0 // pred_check_branch
    %16 = sbr.rel (0) target = $region9
  $region8: #{attn_decoder_forward.1} parent=0 // pred_region
    _
  $region9: #{attn_decoder_forward.1} parent=0 // pred_fallthru
    _
  // Predicated region
  $region10: #{attn_decoder_forward.1} parent=0 // pred_check
    _
  $region11: #{attn_decoder_forward.1} parent=0 // pred_check_branch
    %18 = sbr.rel (0) target = $region13
  $region12: #{attn_decoder_forward.1} parent=0 // pred_region
    _
  $region13: #{attn_decoder_forward.1} parent=0 // pred_fallthru
    _
  // Predicated region
  $region14: #{attn_decoder_forward.1} parent=0 // pred_check
    _
  $region15: #{attn_decoder_forward.1} parent=0 // pred_check_branch
    %20 = sbr.rel (0) target = $region17
  $region16: #{attn_decoder_forward.1} parent=0 // pred_region
    _
  $region17: #{attn_decoder_forward.1} parent=0 // pred_fallthru
    _
  // Predicated region
  $region18: #{attn_decoder_forward.1} parent=0 // pred_check
    _
  $region19: #{attn_decoder_forward.1} parent=0 // pred_check_branch
    %22 = sbr.rel (0) target = $region21
  $region20: #{attn_decoder_forward.1} parent=0 // pred_region
    _
  $region21: #{attn_decoder_forward.1} parent=0 // pred_fallthru
    _
  // Predicated region
  $region22: #{attn_decoder_forward.1} parent=0 // pred_check
    _
  $region23: #{attn_decoder_forward.1} parent=0 // pred_check_branch
    %24 = sbr.rel (0) target = $region25
  $region24: #{attn_decoder_forward.1} parent=0 // pred_region
    _
  $region25: #{attn_decoder_forward.1} parent=0 // pred_fallthru
    _
  // Predicated region
  $region26: #{attn_decoder_forward.1} parent=0 // pred_check
    _
  $region27: #{attn_decoder_forward.1} parent=0 // pred_check_branch
    %26 = sbr.rel (0) target = $region29
  $region28: #{attn_decoder_forward.1} parent=0 // pred_region
    _
  $region29: #{attn_decoder_forward.1} parent=0 // pred_fallthru
    _
  // Predicated region
  $region30: #{attn_decoder_forward.1} parent=0 // pred_check
    _
  $region31: #{attn_decoder_forward.1} parent=0 // pred_check_branch
    %28 = sbr.rel (0) target = $region33
  $region32: #{attn_decoder_forward.1} parent=0 // pred_region
    _
  $region33: #{attn_decoder_forward.1} parent=0 // pred_fallthru
    _
  %v29 = vld [vmem:[%s0] sm:$0x1]
  %v30 = vld [vmem:[%s7] sm:$0x1]
  %v31 = vld [vmem:[%s7 + $0x1] sm:$0x1]
  %v32 = vld [vmem:[%s7 + $0x2] sm:$0x1]
  %v33 = vld [vmem:[%s7 + $0x3] sm:$0x1]
  %v34 = vld [vmem:[%s7 + $0x4] sm:$0x1]
  %v35 = vld [vmem:[%s2] sm:$0xff]
  %v36 = vld [vmem:[%s2 + $0x8] sm:$0xff]
  %v37 = vld [vmem:[%s2 + $0x10] sm:$0xff]
  %v38 = vld [vmem:[%s2 + $0x18] sm:$0xff]
  %v39 = vld [vmem:[%s2 + $0x20] sm:$0xff]
  %v40 = vld [vmem:[%s2 + $0x28] sm:$0xff]
  %v41 = vld [vmem:[%s2 + $0x30] sm:$0xff]
  %v42 = vld [vmem:[%s2 + $0x38] sm:$0xff]
  %vm43 = vcmask 523264
  %v45 = vsel %vm43, %v29, 0
  %47 = vmatprep.subr.mxu0 0.0
  %48 = vmatpush1.msra.mxu0 %v35
  %49 = vmatprep.subr.mxu0 0.0
  %50 = vmatpush1.msra.mxu0 %v36
  %51 = vmatprep.subr.mxu0 0.0
  %52 = vmatpush1.msra.mxu0 %v37
  %53 = vmatprep.subr.mxu0 0.0
  %54 = vmatpush1.msra.mxu0 %v38
  %55 = vmatprep.subr.mxu0 0.0
  %56 = vmatpush1.msra.mxu0 %v39
  %57 = vmatprep.subr.mxu0 0.0
  %58 = vmatpush1.msra.mxu0 %v40
  %59 = vmatprep.subr.mxu0 0.0
  %60 = vmatpush1.msra.mxu0 %v41
  %61 = vmatprep.subr.mxu0 0.0
  %62 = vmatpush1.msra.mxu0 %v42
  %63 = vmatprep.subr.mxu0 0.0
  %64 = vmatpush1.msra.mxu0 0.0
  %65 = vmatprep.subr.mxu0 0.0
  %66 = vmatpush1.msra.mxu0 0.0
  %67 = vmatprep.subr.mxu0 0.0
  %68 = vmatpush1.msra.mxu0 0.0
  %69 = vmatprep.subr.mxu0 0.0
  %70 = vmatpush1.msra.mxu0 0.0
  %71 = vmatprep.subr.mxu0 0.0
  %72 = vmatpush1.msra.mxu0 0.0
  %73 = vmatprep.subr.mxu0 0.0
  %74 = vmatpush1.msra.mxu0 0.0
  %75 = vmatprep.subr.mxu0 0.0
  %76 = vmatpush1.msra.mxu0 0.0
  %77 = vmatprep.subr.mxu0 0.0
  %78 = vmatpush1.msra.mxu0 0.0
  %79 = vmatprep.subr.mxu0 0.0
  %80 = vmatpush1.msra.mxu0 0.0
  %81 = vmatprep.subr.mxu0 0.0
  %82 = vmatpush1.msra.mxu0 0.0
  %83 = vmatprep.subr.mxu0 0.0
  %84 = vmatpush1.msra.mxu0 0.0
  %85 = vmatprep.subr.mxu0 0.0
  %86 = vmatpush1.msra.mxu0 0.0
  %87 = vmatprep.subr.mxu0 0.0
  %88 = vmatpush1.msra.mxu0 0.0
  %89 = vmatprep.subr.mxu0 0.0
  %90 = vmatpush1.msra.mxu0 0.0
  %91 = vmatprep.subr.mxu0 0.0
  %92 = vmatpush1.msra.mxu0 0.0
  %93 = vmatprep.subr.mxu0 0.0
  %94 = vmatpush1.msra.mxu0 0.0
  %95 = vmatprep.subr.mxu0 0.0
  %96 = vmatpush1.msra.mxu0 0.0
  %97 = vmatprep.subr.mxu0 0.0
  %98 = vmatpush1.msra.mxu0 0.0
  %99 = vmatprep.subr.mxu0 0.0
  %100 = vmatpush1.msra.mxu0 0.0
  %101 = vmatprep.subr.mxu0 0.0
  %102 = vmatpush1.msra.mxu0 0.0
  %103 = vmatprep.subr.mxu0 0.0
  %104 = vmatpush1.msra.mxu0 0.0
  %105 = vmatprep.subr.mxu0 0.0
  %106 = vmatpush1.msra.mxu0 0.0
  %107 = vmatprep.subr.mxu0 0.0
  %108 = vmatpush1.msra.mxu0 0.0
  %109 = vmatprep.subr.mxu0 0.0
  %110 = vmatpush1.msra.mxu0 0.0
  %111 = vmatprep.mubr.f32.mxu0 0.0
  %112 = vmatmul.mubr.f32.gmra.mrb[0].mxu0 %v45
  %v113 = vpop.f32.mrb[0].mxu0
  %v114 = vadd.f32 %v30, %v113
  %v115 = vpop.f32.mrb[0].mxu0
  %116 = vdwg.mxu0
  %vm117 = vcmask 73728
  %v118 = vsel %vm117, %v114, -inf
  %119 = vmax.xlane.f32.xlu0 %v118
  %v120 = vpop.xlane.xlu0 %119
  %v121 = vsub.f32 %v114, %v120
  %v122 = vmul.f32 %v121, 1.442695
  %v123 = vpow.pop %v122
  %v124 = vsel %vm117, %v123, 0.0
  %125 = vadd.xlane.f32.xlu0 %v124
  %v126 = vpop.xlane.xlu0 %125
  %v127 = vrcp.pop %v126
  %v128 = vmul.f32 %v123, %v127
  %v129 = vld [vmem:[%s1] sm:$0xff]
  %v130 = vld [vmem:[%s1 + $0x8] sm:$0x3]
  %vm131 = vcmask 80896
  %v133 = vsel %vm131, %v128, 0
  %vm135 = vcmask 1041408
  %v137 = vsel %vm135, %v130, 0
  %139 = vmatprep.subr.mxu0 0.0
  %140 = vmatpush1.msra.mxu0 %v129
  %141 = vmatprep.subr.mxu0 0.0
  %142 = vmatpush1.msra.mxu0 %v137
  %143 = vmatprep.subr.mxu0 0.0
  %144 = vmatpush1.msra.mxu0 0.0
  %145 = vmatprep.subr.mxu0 0.0
  %146 = vmatpush1.msra.mxu0 0.0
  %147 = vmatprep.subr.mxu0 0.0
  %148 = vmatpush1.msra.mxu0 0.0
  %149 = vmatprep.subr.mxu0 0.0
  %150 = vmatpush1.msra.mxu0 0.0
  %151 = vmatprep.subr.mxu0 0.0
  %152 = vmatpush1.msra.mxu0 0.0
  %153 = vmatprep.subr.mxu0 0.0
  %154 = vmatpush1.msra.mxu0 0.0
  %155 = vmatprep.subr.mxu0 0.0
  %156 = vmatpush1.msra.mxu0 0.0
  %157 = vmatprep.subr.mxu0 0.0
  %158 = vmatpush1.msra.mxu0 0.0
  %159 = vmatprep.subr.mxu0 0.0
  %160 = vmatpush1.msra.mxu0 0.0
  %161 = vmatprep.subr.mxu0 0.0
  %162 = vmatpush1.msra.mxu0 0.0
  %163 = vmatprep.subr.mxu0 0.0
  %164 = vmatpush1.msra.mxu0 0.0
  %165 = vmatprep.subr.mxu0 0.0
  %166 = vmatpush1.msra.mxu0 0.0
  %167 = vmatprep.subr.mxu0 0.0
  %168 = vmatpush1.msra.mxu0 0.0
  %169 = vmatprep.subr.mxu0 0.0
  %170 = vmatpush1.msra.mxu0 0.0
  %171 = vmatprep.subr.mxu0 0.0
  %172 = vmatpush1.msra.mxu0 0.0
  %173 = vmatprep.subr.mxu0 0.0
  %174 = vmatpush1.msra.mxu0 0.0
  %175 = vmatprep.subr.mxu0 0.0
  %176 = vmatpush1.msra.mxu0 0.0
  %177 = vmatprep.subr.mxu0 0.0
  %178 = vmatpush1.msra.mxu0 0.0
  %179 = vmatprep.subr.mxu0 0.0
  %180 = vmatpush1.msra.mxu0 0.0
  %181 = vmatprep.subr.mxu0 0.0
  %182 = vmatpush1.msra.mxu0 0.0
  %183 = vmatprep.subr.mxu0 0.0
  %184 = vmatpush1.msra.mxu0 0.0
  %185 = vmatprep.subr.mxu0 0.0
  %186 = vmatpush1.msra.mxu0 0.0
  %187 = vmatprep.subr.mxu0 0.0
  %188 = vmatpush1.msra.mxu0 0.0
  %189 = vmatprep.subr.mxu0 0.0
  %190 = vmatpush1.msra.mxu0 0.0
  %191 = vmatprep.subr.mxu0 0.0
  %192 = vmatpush1.msra.mxu0 0.0
  %193 = vmatprep.subr.mxu0 0.0
  %194 = vmatpush1.msra.mxu0 0.0
  %195 = vmatprep.subr.mxu0 0.0
  %196 = vmatpush1.msra.mxu0 0.0
  %197 = vmatprep.subr.mxu0 0.0
  %198 = vmatpush1.msra.mxu0 0.0
  %199 = vmatprep.subr.mxu0 0.0
  %200 = vmatpush1.msra.mxu0 0.0
  %201 = vmatprep.subr.mxu0 0.0
  %202 = vmatpush1.msra.mxu0 0.0
  %203 = vmatprep.mubr.f32.mxu0 0.0
  %204 = vmatmul.mubr.f32.gmra.mrb[0].mxu0 %v133
  %v205 = vpop.f32.mrb[0].mxu0
  %v206 = vadd.f32 0.0, %v205
  %v207 = vpop.f32.mrb[0].mxu0
  %208 = vdwg.mxu0
  %v209 = vld [vmem:[%s3] sm:$0xff]
  %v210 = vld [vmem:[%s3 + $0x8] sm:$0xff]
  %v211 = vld [vmem:[%s3 + $0x10] sm:$0xff]
  %v212 = vld [vmem:[%s3 + $0x18] sm:$0xff]
  %v213 = vld [vmem:[%s3 + $0x20] sm:$0xff]
  %v214 = vld [vmem:[%s3 + $0x28] sm:$0xff]
  %v215 = vld [vmem:[%s3 + $0x30] sm:$0xff]
  %v216 = vld [vmem:[%s3 + $0x38] sm:$0xff]
  %vm217 = vcmask 261120
  %v219 = vsel %vm217, %v206, 0
  %221 = vmatprep.subr.mxu0 0.0
  %222 = vmatpush1.msra.mxu0 %v213
  %223 = vmatprep.subr.mxu0 0.0
  %224 = vmatpush1.msra.mxu0 %v214
  %225 = vmatprep.subr.mxu0 0.0
  %226 = vmatpush1.msra.mxu0 %v215
  %227 = vmatprep.subr.mxu0 0.0
  %228 = vmatpush1.msra.mxu0 %v216
  %229 = vmatprep.subr.mxu0 0.0
  %230 = vmatpush1.msra.mxu0 0.0
  %231 = vmatprep.subr.mxu0 0.0
  %232 = vmatpush1.msra.mxu0 0.0
  %233 = vmatprep.subr.mxu0 0.0
  %234 = vmatpush1.msra.mxu0 0.0
  %235 = vmatprep.subr.mxu0 0.0
  %236 = vmatpush1.msra.mxu0 0.0
  %237 = vmatprep.subr.mxu0 0.0
  %238 = vmatpush1.msra.mxu0 0.0
  %239 = vmatprep.subr.mxu0 0.0
  %240 = vmatpush1.msra.mxu0 0.0
  %241 = vmatprep.subr.mxu0 0.0
  %242 = vmatpush1.msra.mxu0 0.0
  %243 = vmatprep.subr.mxu0 0.0
  %244 = vmatpush1.msra.mxu0 0.0
  %245 = vmatprep.subr.mxu0 0.0
  %246 = vmatpush1.msra.mxu0 0.0
  %247 = vmatprep.subr.mxu0 0.0
  %248 = vmatpush1.msra.mxu0 0.0
  %249 = vmatprep.subr.mxu0 0.0
  %250 = vmatpush1.msra.mxu0 0.0
  %251 = vmatprep.subr.mxu0 0.0
  %252 = vmatpush1.msra.mxu0 0.0
  %253 = vmatprep.subr.mxu0 0.0
  %254 = vmatpush1.msra.mxu0 0.0
  %255 = vmatprep.subr.mxu0 0.0
  %256 = vmatpush1.msra.mxu0 0.0
  %257 = vmatprep.subr.mxu0 0.0
  %258 = vmatpush1.msra.mxu0 0.0
  %259 = vmatprep.subr.mxu0 0.0
  %260 = vmatpush1.msra.mxu0 0.0
  %261 = vmatprep.subr.mxu0 0.0
  %262 = vmatpush1.msra.mxu0 0.0
  %263 = vmatprep.subr.mxu0 0.0
  %264 = vmatpush1.msra.mxu0 0.0
  %265 = vmatprep.subr.mxu0 0.0
  %266 = vmatpush1.msra.mxu0 0.0
  %267 = vmatprep.subr.mxu0 0.0
  %268 = vmatpush1.msra.mxu0 0.0
  %269 = vmatprep.subr.mxu0 0.0
  %270 = vmatpush1.msra.mxu0 0.0
  %271 = vmatprep.subr.mxu0 0.0
  %272 = vmatpush1.msra.mxu0 0.0
  %273 = vmatprep.subr.mxu0 0.0
  %274 = vmatpush1.msra.mxu0 0.0
  %275 = vmatprep.subr.mxu0 0.0
  %276 = vmatpush1.msra.mxu0 0.0
  %277 = vmatprep.subr.mxu0 0.0
  %278 = vmatpush1.msra.mxu0 0.0
  %279 = vmatprep.subr.mxu0 0.0
  %280 = vmatpush1.msra.mxu0 0.0
  %281 = vmatprep.subr.mxu0 0.0
  %282 = vmatpush1.msra.mxu0 0.0
  %283 = vmatprep.subr.mxu0 0.0
  %284 = vmatpush1.msra.mxu0 0.0
  %285 = vmatprep.mubr.f32.mxu0 0.0
  %286 = vmatmul.mubr.f32.gmra.mrb[0].mxu0 %v219
  %v287 = vpop.f32.mrb[0].mxu0
  %v288 = vadd.f32 0.0, %v287
  %v289 = vpop.f32.mrb[0].mxu0
  %290 = vdwg.mxu0
  %v291 = vsel %vm217, %v29, 0
  %293 = vmatprep.subr.mxu0 0.0
  %294 = vmatpush1.msra.mxu0 %v209
  %295 = vmatprep.subr.mxu0 0.0
  %296 = vmatpush1.msra.mxu0 %v210
  %297 = vmatprep.subr.mxu0 0.0
  %298 = vmatpush1.msra.mxu0 %v211
  %299 = vmatprep.subr.mxu0 0.0
  %300 = vmatpush1.msra.mxu0 %v212
  %301 = vmatprep.subr.mxu0 0.0
  %302 = vmatpush1.msra.mxu0 0.0
  %303 = vmatprep.subr.mxu0 0.0
  %304 = vmatpush1.msra.mxu0 0.0
  %305 = vmatprep.subr.mxu0 0.0
  %306 = vmatpush1.msra.mxu0 0.0
  %307 = vmatprep.subr.mxu0 0.0
  %308 = vmatpush1.msra.mxu0 0.0
  %309 = vmatprep.subr.mxu0 0.0
  %310 = vmatpush1.msra.mxu0 0.0
  %311 = vmatprep.subr.mxu0 0.0
  %312 = vmatpush1.msra.mxu0 0.0
  %313 = vmatprep.subr.mxu0 0.0
  %314 = vmatpush1.msra.mxu0 0.0
  %315 = vmatprep.subr.mxu0 0.0
  %316 = vmatpush1.msra.mxu0 0.0
  %317 = vmatprep.subr.mxu0 0.0
  %318 = vmatpush1.msra.mxu0 0.0
  %319 = vmatprep.subr.mxu0 0.0
  %320 = vmatpush1.msra.mxu0 0.0
  %321 = vmatprep.subr.mxu0 0.0
  %322 = vmatpush1.msra.mxu0 0.0
  %323 = vmatprep.subr.mxu0 0.0
  %324 = vmatpush1.msra.mxu0 0.0
  %325 = vmatprep.subr.mxu0 0.0
  %326 = vmatpush1.msra.mxu0 0.0
  %327 = vmatprep.subr.mxu0 0.0
  %328 = vmatpush1.msra.mxu0 0.0
  %329 = vmatprep.subr.mxu0 0.0
  %330 = vmatpush1.msra.mxu0 0.0
  %331 = vmatprep.subr.mxu0 0.0
  %332 = vmatpush1.msra.mxu0 0.0
  %333 = vmatprep.subr.mxu0 0.0
  %334 = vmatpush1.msra.mxu0 0.0
  %335 = vmatprep.subr.mxu0 0.0
  %336 = vmatpush1.msra.mxu0 0.0
  %337 = vmatprep.subr.mxu0 0.0
  %338 = vmatpush1.msra.mxu0 0.0
  %339 = vmatprep.subr.mxu0 0.0
  %340 = vmatpush1.msra.mxu0 0.0
  %341 = vmatprep.subr.mxu0 0.0
  %342 = vmatpush1.msra.mxu0 0.0
  %343 = vmatprep.subr.mxu0 0.0
  %344 = vmatpush1.msra.mxu0 0.0
  %345 = vmatprep.subr.mxu0 0.0
  %346 = vmatpush1.msra.mxu0 0.0
  %347 = vmatprep.subr.mxu0 0.0
  %348 = vmatpush1.msra.mxu0 0.0
  %349 = vmatprep.subr.mxu0 0.0
  %350 = vmatpush1.msra.mxu0 0.0
  %351 = vmatprep.subr.mxu0 0.0
  %352 = vmatpush1.msra.mxu0 0.0
  %353 = vmatprep.subr.mxu0 0.0
  %354 = vmatpush1.msra.mxu0 0.0
  %355 = vmatprep.subr.mxu0 0.0
  %356 = vmatpush1.msra.mxu0 0.0
  %357 = vmatprep.mubr.f32.mxu0 0.0
  %358 = vmatmul.mubr.f32.gmra.mrb[0].mxu0 %v291
  %v359 = vpop.f32.mrb[0].mxu0
  %v360 = vadd.f32 %v288, %v359
  %v361 = vpop.f32.mrb[0].mxu0
  %362 = vdwg.mxu0
  %v363 = vadd.f32 %v360, %v31
  %v364 = vmax.f32 %v363, 0.0
  %v365 = vld [vmem:[%s4] sm:$0xff]
  %v366 = vld [vmem:[%s4 + $0x8] sm:$0xff]
  %v367 = vld [vmem:[%s4 + $0x10] sm:$0xff]
  %v368 = vld [vmem:[%s4 + $0x18] sm:$0xff]
  %v370 = vsel %vm217, %v364, 0
  %372 = vmatprep.subr.mxu0 0.0
  %373 = vmatpush1.msra.mxu0 %v365
  %374 = vmatprep.subr.mxu0 0.0
  %375 = vmatpush1.msra.mxu0 %v366
  %376 = vmatprep.subr.mxu0 0.0
  %377 = vmatpush1.msra.mxu0 %v367
  %378 = vmatprep.subr.mxu0 0.0
  %379 = vmatpush1.msra.mxu0 %v368
  %380 = vmatprep.subr.mxu0 0.0
  %381 = vmatpush1.msra.mxu0 0.0
  %382 = vmatprep.subr.mxu0 0.0
  %383 = vmatpush1.msra.mxu0 0.0
  %384 = vmatprep.subr.mxu0 0.0
  %385 = vmatpush1.msra.mxu0 0.0
  %386 = vmatprep.subr.mxu0 0.0
  %387 = vmatpush1.msra.mxu0 0.0
  %388 = vmatprep.subr.mxu0 0.0
  %389 = vmatpush1.msra.mxu0 0.0
  %390 = vmatprep.subr.mxu0 0.0
  %391 = vmatpush1.msra.mxu0 0.0
  %392 = vmatprep.subr.mxu0 0.0
  %393 = vmatpush1.msra.mxu0 0.0
  %394 = vmatprep.subr.mxu0 0.0
  %395 = vmatpush1.msra.mxu0 0.0
  %396 = vmatprep.subr.mxu0 0.0
  %397 = vmatpush1.msra.mxu0 0.0
  %398 = vmatprep.subr.mxu0 0.0
  %399 = vmatpush1.msra.mxu0 0.0
  %400 = vmatprep.subr.mxu0 0.0
  %401 = vmatpush1.msra.mxu0 0.0
  %402 = vmatprep.subr.mxu0 0.0
  %403 = vmatpush1.msra.mxu0 0.0
  %404 = vmatprep.subr.mxu0 0.0
  %405 = vmatpush1.msra.mxu0 0.0
  %406 = vmatprep.subr.mxu0 0.0
  %407 = vmatpush1.msra.mxu0 0.0
  %408 = vmatprep.subr.mxu0 0.0
  %409 = vmatpush1.msra.mxu0 0.0
  %410 = vmatprep.subr.mxu0 0.0
  %411 = vmatpush1.msra.mxu0 0.0
  %412 = vmatprep.subr.mxu0 0.0
  %413 = vmatpush1.msra.mxu0 0.0
  %414 = vmatprep.subr.mxu0 0.0
  %415 = vmatpush1.msra.mxu0 0.0
  %416 = vmatprep.subr.mxu0 0.0
  %417 = vmatpush1.msra.mxu0 0.0
  %418 = vmatprep.subr.mxu0 0.0
  %419 = vmatpush1.msra.mxu0 0.0
  %420 = vmatprep.subr.mxu0 0.0
  %421 = vmatpush1.msra.mxu0 0.0
  %422 = vmatprep.subr.mxu0 0.0
  %423 = vmatpush1.msra.mxu0 0.0
  %424 = vmatprep.subr.mxu0 0.0
  %425 = vmatpush1.msra.mxu0 0.0
  %426 = vmatprep.subr.mxu0 0.0
  %427 = vmatpush1.msra.mxu0 0.0
  %428 = vmatprep.subr.mxu0 0.0
  %429 = vmatpush1.msra.mxu0 0.0
  %430 = vmatprep.subr.mxu0 0.0
  %431 = vmatpush1.msra.mxu0 0.0
  %432 = vmatprep.subr.mxu0 0.0
  %433 = vmatpush1.msra.mxu0 0.0
  %434 = vmatprep.subr.mxu0 0.0
  %435 = vmatpush1.msra.mxu0 0.0
  %436 = vmatprep.mubr.f32.mxu0 0.0
  %437 = vmatmul.mubr.f32.gmra.mrb[0].mxu0 %v370
  %v438 = vpop.f32.mrb[0].mxu0
  %v439 = vadd.f32 %v32, %v438
  %v440 = vpop.f32.mrb[0].mxu0
  %441 = vdwg.mxu0
  %v442 = vld [vmem:[%s5] sm:$0xff]
  %v443 = vld [vmem:[%s5 + $0x8] sm:$0xff]
  %v444 = vld [vmem:[%s5 + $0x10] sm:$0xff]
  %v445 = vld [vmem:[%s5 + $0x18] sm:$0xff]
  %v446 = vlaneseq
  %v447 = vshrl.u32 %v446, 7
  %v448 = vsub.s32 0, %v447
  %v449 = vrot.slane %v29, %v448
  %450 = vrot.lane.b32.xlu0 %v449, 96
  %v451 = vpop.permute.xlu0 %450
  %v452 = vsel %vm217, %v451, 0
  %454 = vmatprep.subr.mxu0 0.0
  %455 = vmatpush1.msra.mxu0 %v442
  %456 = vmatprep.subr.mxu0 0.0
  %457 = vmatpush1.msra.mxu0 %v443
  %458 = vmatprep.subr.mxu0 0.0
  %459 = vmatpush1.msra.mxu0 %v444
  %460 = vmatprep.subr.mxu0 0.0
  %461 = vmatpush1.msra.mxu0 %v445
  %462 = vmatprep.subr.mxu0 0.0
  %463 = vmatpush1.msra.mxu0 0.0
  %464 = vmatprep.subr.mxu0 0.0
  %465 = vmatpush1.msra.mxu0 0.0
  %466 = vmatprep.subr.mxu0 0.0
  %467 = vmatpush1.msra.mxu0 0.0
  %468 = vmatprep.subr.mxu0 0.0
  %469 = vmatpush1.msra.mxu0 0.0
  %470 = vmatprep.subr.mxu0 0.0
  %471 = vmatpush1.msra.mxu0 0.0
  %472 = vmatprep.subr.mxu0 0.0
  %473 = vmatpush1.msra.mxu0 0.0
  %474 = vmatprep.subr.mxu0 0.0
  %475 = vmatpush1.msra.mxu0 0.0
  %476 = vmatprep.subr.mxu0 0.0
  %477 = vmatpush1.msra.mxu0 0.0
  %478 = vmatprep.subr.mxu0 0.0
  %479 = vmatpush1.msra.mxu0 0.0
  %480 = vmatprep.subr.mxu0 0.0
  %481 = vmatpush1.msra.mxu0 0.0
  %482 = vmatprep.subr.mxu0 0.0
  %483 = vmatpush1.msra.mxu0 0.0
  %484 = vmatprep.subr.mxu0 0.0
  %485 = vmatpush1.msra.mxu0 0.0
  %486 = vmatprep.subr.mxu0 0.0
  %487 = vmatpush1.msra.mxu0 0.0
  %488 = vmatprep.subr.mxu0 0.0
  %489 = vmatpush1.msra.mxu0 0.0
  %490 = vmatprep.subr.mxu0 0.0
  %491 = vmatpush1.msra.mxu0 0.0
  %492 = vmatprep.subr.mxu0 0.0
  %493 = vmatpush1.msra.mxu0 0.0
  %494 = vmatprep.subr.mxu0 0.0
  %495 = vmatpush1.msra.mxu0 0.0
  %496 = vmatprep.subr.mxu0 0.0
  %497 = vmatpush1.msra.mxu0 0.0
  %498 = vmatprep.subr.mxu0 0.0
  %499 = vmatpush1.msra.mxu0 0.0
  %500 = vmatprep.subr.mxu0 0.0
  %501 = vmatpush1.msra.mxu0 0.0
  %502 = vmatprep.subr.mxu0 0.0
  %503 = vmatpush1.msra.mxu0 0.0
  %504 = vmatprep.subr.mxu0 0.0
  %505 = vmatpush1.msra.mxu0 0.0
  %506 = vmatprep.subr.mxu0 0.0
  %507 = vmatpush1.msra.mxu0 0.0
  %508 = vmatprep.subr.mxu0 0.0
  %509 = vmatpush1.msra.mxu0 0.0
  %510 = vmatprep.subr.mxu0 0.0
  %511 = vmatpush1.msra.mxu0 0.0
  %512 = vmatprep.subr.mxu0 0.0
  %513 = vmatpush1.msra.mxu0 0.0
  %514 = vmatprep.subr.mxu0 0.0
  %515 = vmatpush1.msra.mxu0 0.0
  %516 = vmatprep.subr.mxu0 0.0
  %517 = vmatpush1.msra.mxu0 0.0
  %518 = vmatprep.mubr.f32.mxu0 0.0
  %519 = vmatmul.mubr.f32.gmra.mrb[0].mxu0 %v452
  %v520 = vpop.f32.mrb[0].mxu0
  %v521 = vadd.f32 %v33, %v520
  %v522 = vpop.f32.mrb[0].mxu0
  %523 = vdwg.mxu0
  %v524 = vadd.f32 %v439, %v521
  %v525 = vxor.u32 %v524, 2147483648
  %v526 = vmul.f32 %v525, 1.442695
  %v527 = vpow.pop %v526
  %v528 = vadd.f32 %v527, 1.0
  %v529 = vrcp.pop %v528
  %v530 = vmul.f32 1.0, %v529
  %532 = vrot.lane.b32.xlu0 %v521, 64
  %v533 = vpop.permute.xlu0 %532
  %v535 = vmul.f32 %v530, %v533
  %537 = vrot.lane.b32.xlu0 %v535, 64
  %v538 = vpop.permute.xlu0 %537
  %v540 = vadd.f32 %v439, %v538
  %v541 = vtanh.pop %v540
  %v542 = vsub.f32 1.0, %v530
  %544 = vrot.lane.b32.xlu0 %v541, 96
  %v545 = vpop.permute.xlu0 %544
  %v547 = vmul.f32 %v542, %v545
  %v548 = vmul.f32 %v530, %v29
  %v549 = vadd.f32 %v547, %v548
  %v550 = vld [vmem:[%s6] sm:$0xff]
  %v551 = vld [vmem:[%s6 + $0x8] sm:$0xff]
  %v552 = vld [vmem:[%s6 + $0x10] sm:$0xff]
  %v553 = vld [vmem:[%s6 + $0x18] sm:$0xff]
  %555 = vrot.lane.b32.xlu0 %v549, 96
  %v556 = vpop.permute.xlu0 %555
  %v557 = vsel %vm217, %v556, 0
  %559 = vmatprep.subr.mxu0 0.0
  %560 = vmatpush1.msra.mxu0 %v550
  %561 = vmatprep.subr.mxu0 0.0
  %562 = vmatpush1.msra.mxu0 %v551
  %563 = vmatprep.subr.mxu0 0.0
  %564 = vmatpush1.msra.mxu0 %v552
  %565 = vmatprep.subr.mxu0 0.0
  %566 = vmatpush1.msra.mxu0 %v553
  %567 = vmatprep.subr.mxu0 0.0
  %568 = vmatpush1.msra.mxu0 0.0
  %569 = vmatprep.subr.mxu0 0.0
  %570 = vmatpush1.msra.mxu0 0.0
  %571 = vmatprep.subr.mxu0 0.0
  %572 = vmatpush1.msra.mxu0 0.0
  %573 = vmatprep.subr.mxu0 0.0
  %574 = vmatpush1.msra.mxu0 0.0
  %575 = vmatprep.subr.mxu0 0.0
  %576 = vmatpush1.msra.mxu0 0.0
  %577 = vmatprep.subr.mxu0 0.0
  %578 = vmatpush1.msra.mxu0 0.0
  %579 = vmatprep.subr.mxu0 0.0
  %580 = vmatpush1.msra.mxu0 0.0
  %581 = vmatprep.subr.mxu0 0.0
  %582 = vmatpush1.msra.mxu0 0.0
  %583 = vmatprep.subr.mxu0 0.0
  %584 = vmatpush1.msra.mxu0 0.0
  %585 = vmatprep.subr.mxu0 0.0
  %586 = vmatpush1.msra.mxu0 0.0
  %587 = vmatprep.subr.mxu0 0.0
  %588 = vmatpush1.msra.mxu0 0.0
  %589 = vmatprep.subr.mxu0 0.0
  %590 = vmatpush1.msra.mxu0 0.0
  %591 = vmatprep.subr.mxu0 0.0
  %592 = vmatpush1.msra.mxu0 0.0
  %593 = vmatprep.subr.mxu0 0.0
  %594 = vmatpush1.msra.mxu0 0.0
  %595 = vmatprep.subr.mxu0 0.0
  %596 = vmatpush1.msra.mxu0 0.0
  %597 = vmatprep.subr.mxu0 0.0
  %598 = vmatpush1.msra.mxu0 0.0
  %599 = vmatprep.subr.mxu0 0.0
  %600 = vmatpush1.msra.mxu0 0.0
  %601 = vmatprep.subr.mxu0 0.0
  %602 = vmatpush1.msra.mxu0 0.0
  %603 = vmatprep.subr.mxu0 0.0
  %604 = vmatpush1.msra.mxu0 0.0
  %605 = vmatprep.subr.mxu0 0.0
  %606 = vmatpush1.msra.mxu0 0.0
  %607 = vmatprep.subr.mxu0 0.0
  %608 = vmatpush1.msra.mxu0 0.0
  %609 = vmatprep.subr.mxu0 0.0
  %610 = vmatpush1.msra.mxu0 0.0
  %611 = vmatprep.subr.mxu0 0.0
  %612 = vmatpush1.msra.mxu0 0.0
  %613 = vmatprep.subr.mxu0 0.0
  %614 = vmatpush1.msra.mxu0 0.0
  %615 = vmatprep.subr.mxu0 0.0
  %616 = vmatpush1.msra.mxu0 0.0
  %617 = vmatprep.subr.mxu0 0.0
  %618 = vmatpush1.msra.mxu0 0.0
  %619 = vmatprep.subr.mxu0 0.0
  %620 = vmatpush1.msra.mxu0 0.0
  %621 = vmatprep.subr.mxu0 0.0
  %622 = vmatpush1.msra.mxu0 0.0
  %623 = vmatprep.mubr.f32.mxu0 0.0
  %624 = vmatmul.mubr.f32.gmra.mrb[0].mxu0 %v557
  %v625 = vpop.f32.mrb[0].mxu0
  %v626 = vadd.f32 %v34, %v625
  %v627 = vpop.f32.mrb[0].mxu0
  %628 = vdwg.mxu0
  %vm629 = vcmask 253952
  %v630 = vsel %vm629, %v626, -inf
  %631 = vmax.xlane.f32.xlu0 %v630
  %v632 = vpop.xlane.xlu0 %631
  %v633 = vsub.f32 %v626, %v632
  %v634 = vmul.f32 %v633, 1.442695
  %v635 = vpow.pop %v634
  %v636 = vsel %vm629, %v635, 0.0
  %637 = vadd.xlane.f32.xlu0 %v636
  %v638 = vpop.xlane.xlu0 %637
  %v639 = vlog2.pop %v638
  %v640 = vmul.f32 %v639, 0.6931472
  %v641 = vsub.f32 %v633, %v640
  %642 = vst [vmem:[%s8] sm:$0x7] 0.0
  %643 = vst.msk [vmem:[%s8] sm:$0x1] %vm629, %v641
  %645 = vst.msk [vmem:[%s8 + $0x1] sm:$0x1] %vm629, %v556
  %646 = vst.msk [vmem:[%s8 + $0x2] sm:$0x1] %vm117, %v128
  // Predicated region
  $region34: #{attn_decoder_forward.1} parent=0 // pred_check
    _
  $region35: #{attn_decoder_forward.1} parent=0 // pred_check_branch
    %648 = sbr.rel (0) target = $region37
  $region36: #{attn_decoder_forward.1} parent=0 // pred_region
    _
  $region37: #{attn_decoder_forward.1} parent=0 // pred_fallthru
    _
  // Predicated region
  $region38: #{attn_decoder_forward.1} parent=0 // pred_check
    _
  $region39: #{attn_decoder_forward.1} parent=0 // pred_check_branch
    %650 = sbr.rel (0) target = $region41
  $region40: #{attn_decoder_forward.1} parent=0 // pred_region
    _
  $region41: #{attn_decoder_forward.1} parent=0 // pred_fallthru
    _

</llo_original>
